<compile_context>
chip_gen: v5e
topology: v5e:2x2
jax: 0.10.0
libtpu: 0.0.40
codegen_flags: <defaults>
</compile_context>

<pallas_src>
import math

import numpy as np
import jax
import jax.numpy as jnp
from jax import lax
from jax.experimental import pallas as pl
from jax.experimental.pallas import tpu as pltpu

# ---- config (synthetic, small) ---------------------------------------------
B = 2          # batch
T = 8          # sequence length (= block_size)
C = 32         # n_embd
NH = 4         # n_head
HD = C // NH   # head dim
EPS = 1e-5

BT = B * T          # flattened rows for LN / QKV / projection
R = NH * B * T      # stacked rows for attention
NEG_INF = -1e30     # finite "minus infinity" for masking (no NaN risk)


# ---- trace-time constant attention bias -------------------------------------
def build_mask_bias(order):
    """Additive attention bias (0 = allowed, -1e30 = masked), numpy constant.

    `order` documents how the stacked attention rows are laid out:
      'rh': row = (b*T + t)*NH + h   (pure-reshape stacking)
      'hr': row = h*(B*T) + b*T + t  (slice+concat stacking, fallback)
    Allowed iff same batch, same head, and key position <= query position.
    """
    i = np.arange(R)
    if order == "rh":
        h, r = i % NH, i // NH
    elif order == "hr":
        h, r = i // BT, i % BT
    else:
        raise ValueError(order)
    b, t = r // T, r % T
    ok = ((h[:, None] == h[None, :])
          & (b[:, None] == b[None, :])
          & (t[:, None] >= t[None, :]))
    return np.where(ok, 0.0, NEG_INF).astype(np.float32)


# ---- Pallas kernel -----------------------------------------------------------
def _make_kernel(stack, unstack):
    """stack:  (BT, C) value -> (R, HD) head-stacked value
       unstack:(R, HD) value -> (BT, C) recombined value"""

    def kernel(x_ref, wqkv_ref, wproj_ref, params_ref, mbias_ref, o_ref):
        x = x_ref[...]                                   # (BT, C) f32

        prm = params_ref[...]                            # (2, 3C) packed params
        b_qkv = prm[0:1, :]                              # (1, 3C)  (Q part pre-scaled)
        ln_w = prm[1:2, 0:C]                             # (1, C)
        ln_b = prm[1:2, C:2 * C]                         # (1, C)
        b_pr = prm[1:2, 2 * C:3 * C]                     # (1, C)

        # --- LayerNorm (eps=1e-5, elementwise affine) ---
        mu = jnp.mean(x, axis=-1, keepdims=True)
        var = jnp.mean((x - mu) ** 2, axis=-1, keepdims=True)
        xn = (x - mu) * lax.rsqrt(var + EPS) * ln_w + ln_b

        # --- fused QKV projection (1/sqrt(HD) folded into the Q columns) ---
        qkv = jnp.dot(xn, wqkv_ref[...],
                      preferred_element_type=jnp.float32) + b_qkv   # (BT, 3C)

        # --- stack heads along sublanes (3 aligned lane slices + relayout) ---
        qs = stack(qkv[:, 0:C])                          # (R, HD)
        ks = stack(qkv[:, C:2 * C])                      # (R, HD)
        vs = stack(qkv[:, 2 * C:3 * C])                  # (R, HD)

        # --- attention: one score matmul + one PV matmul for all heads/batch ---
        s = jnp.dot(qs, ks.T,
                    preferred_element_type=jnp.float32) + mbias_ref[...]  # (R, R)
        m = jnp.max(s, axis=-1, keepdims=True)           # finite (diag unmasked)
        p = jnp.exp(s - m)
        denom = jnp.sum(p, axis=-1, keepdims=True)
        att = p * pl.reciprocal(denom, approx=True)      # EUP reciprocal

        ys = jnp.dot(att, vs, preferred_element_type=jnp.float32)    # (R, HD)
        y = unstack(ys)                                               # (BT, C)

        # --- output projection + residual (dropout p=0 -> identity) ---
        y = jnp.dot(y, wproj_ref[...], preferred_element_type=jnp.float32) + b_pr
        o_ref[...] = y + x

    return kernel


# ---- wrapper -----------------------------------------------------------------
def prepare_params(wqkv, bqkv, wproj, bproj, ln_w, ln_b):
    """One-time parameter prep (not per-call input scaling):
       * transpose Linear weights from PyTorch (out,in) to matmul (in,out),
       * fold the 1/sqrt(HD) attention scale into the Q weight columns/bias,
       * pack the four small 1-D params into a single (2, 3C) VMEM input."""
    scale = 1.0 / math.sqrt(HD)
    wqkv_t = wqkv.T                                       # (C, 3C)
    wqkv_t = wqkv_t.at[:, 0:C].multiply(scale)
    bqkv_s = bqkv.at[0:C].multiply(scale)
    packed = jnp.stack(
        [bqkv_s, jnp.concatenate([ln_w, ln_b, bproj])], axis=0)      # (2, 3C)
    return wqkv_t, wproj.T, packed


def block_forward(x, wqkv_p, wproj_p, params_p, variant="reshape"):
    """x: (B, T, C). Weights already prepared by `prepare_params`."""
    if variant == "reshape":
        # row order (b, t, h): lane->sublane stacking is a single pure reshape
        stack = lambda t: t.reshape(R, HD)
        unstack = lambda t: t.reshape(BT, C)
        mbias = jnp.asarray(build_mask_bias("rh"))
    else:
        # proven slice+concat stacking, row order (h, b, t)
        stack = lambda t: jnp.concatenate(
            [t[:, h * HD:(h + 1) * HD] for h in range(NH)], axis=0)
        unstack = lambda t: jnp.concatenate(
            [t[h * BT:(h + 1) * BT, :] for h in range(NH)], axis=1)
        mbias = jnp.asarray(build_mask_bias("hr"))

    x2 = x.reshape(BT, C)   # fold batch into the matmul M dimension
    vmem = pl.BlockSpec(memory_space=pltpu.MemorySpace.VMEM)
    out2 = pl.pallas_call(
        _make_kernel(stack, unstack),
        out_shape=jax.ShapeDtypeStruct((BT, C), jnp.float32),
        # no grid: single invocation, whole arrays VMEM-resident, no
        # double-buffering of single-use inputs.
        in_specs=[vmem] * 5,
        out_specs=vmem,
        input_output_aliases={0: 0},     # reuse x2's HBM buffer for the output
    )(x2, wqkv_p, wproj_p, params_p, mbias)
    return out2.reshape(B, T, C)


# ---- pure-JAX reference (mirrors the PyTorch forward) ------------------------
def block_reference(x, wqkv, bqkv, wproj, bproj, ln_w, ln_b):
    mu = x.mean(-1, keepdims=True)
    var = ((x - mu) ** 2).mean(-1, keepdims=True)
    xn = (x - mu) / jnp.sqrt(var + EPS) * ln_w + ln_b
    qkv = xn @ wqkv.T + bqkv
    q, k, v = jnp.split(qkv, 3, axis=-1)
    q = q.reshape(B, T, NH, HD).transpose(0, 2, 1, 3)
    k = k.reshape(B, T, NH, HD).transpose(0, 2, 1, 3)
    v = v.reshape(B, T, NH, HD).transpose(0, 2, 1, 3)
    s = jnp.einsum("bhtd,bhsd->bhts", q, k) / math.sqrt(HD)
    mask = jnp.tril(jnp.ones((T, T), bool))
    s = jnp.where(mask, s, -jnp.inf)
    att = jax.nn.softmax(s, axis=-1)
    y = jnp.einsum("bhts,bhsd->bhtd", att, v)
    y = y.transpose(0, 2, 1, 3).reshape(B, T, C)
    y = y @ wproj.T + bproj
    return y + x


if __name__ == "__main__":
    key = jax.random.PRNGKey(0)
    kx, kw1, kb1, kw2, kb2 = jax.random.split(key, 5)

    # input
    x = jax.random.normal(kx, (B, T, C), dtype=jnp.float32)

    # parameters (deterministic init; Linear-style uniform fan-in scaling),
    # PyTorch layout: weight (out_features, in_features)
    bound = 1.0 / math.sqrt(C)
    wqkv = jax.random.uniform(kw1, (3 * C, C), jnp.float32, -bound, bound)
    bqkv = jax.random.uniform(kb1, (3 * C,), jnp.float32, -bound, bound)
    wproj = jax.random.uniform(kw2, (C, C), jnp.float32, -bound, bound)
    bproj = jax.random.uniform(kb2, (C,), jnp.float32, -bound, bound)
    ln_w = jnp.ones((C,), jnp.float32)
    ln_b = jnp.zeros((C,), jnp.float32)

    wqkv_p, wproj_p, params_p = prepare_params(wqkv, bqkv, wproj, bproj, ln_w, ln_b)
    ref = block_reference(x, wqkv, bqkv, wproj, bproj, ln_w, ln_b)

    # tolerance covers the approximate EUP reciprocal in the softmax (and the
    # rsqrt-vs-1/sqrt ulp difference); real bugs produce O(0.1-1) errors.
    def _close(a):
        return bool(jnp.allclose(a, ref, atol=5e-3, rtol=5e-3))

    out = None
    try:
        out = jax.block_until_ready(
            block_forward(x, wqkv_p, wproj_p, params_p, variant="reshape"))
        if not _close(out):
            out = None
    except Exception:
        out = None
    if out is None:
        # TODO(synk): the single-reshape lane->sublane head stacking is the
        # preferred relayout; if Mosaic rejects the small non-128-aligned
        # reshape on this jax/libtpu version, fall back to the proven
        # slice+concat stacking (same constant mask / folded scale / packing).
        out = jax.block_until_ready(
            block_forward(x, wqkv_p, wproj_p, params_p, variant="concat"))

    assert out.shape == (B, T, C)
    assert _close(out), f"max abs err {jnp.max(jnp.abs(out - ref))}"
    print("KERNEL_OK")
</pallas_src>

<mosaic_0001>
module attributes {stable_mosaic.version = 11 : i64} {
  func.func @kernel(%arg0: memref<16x32xf32, #tpu.memory_space<vmem>>, %arg1: memref<32x96xf32, #tpu.memory_space<vmem>>, %arg2: memref<32x32xf32, #tpu.memory_space<vmem>>, %arg3: memref<2x96xf32, #tpu.memory_space<vmem>>, %arg4: memref<64x64xf32, #tpu.memory_space<vmem>>, %arg5: memref<16x32xf32, #tpu.memory_space<vmem>>) attributes {dimension_semantics = [], scalar_prefetch = 0 : i64, scratch_operands = 0 : i64, tpu.core_type = #tpu.core_type<tc>} {
    %c0 = arith.constant 0 : index
    %c0_0 = arith.constant 0 : index
    %0 = vector.load %arg0[%c0, %c0_0] : memref<16x32xf32, #tpu.memory_space<vmem>>, vector<16x32xf32>
    %c0_1 = arith.constant 0 : index
    %c0_2 = arith.constant 0 : index
    %1 = vector.load %arg3[%c0_1, %c0_2] : memref<2x96xf32, #tpu.memory_space<vmem>>, vector<2x96xf32>
    %2 = vector.extract_strided_slice %1 {offsets = [0, 0], sizes = [1, 96], strides = [1, 1]} : vector<2x96xf32> to vector<1x96xf32>
    %3 = vector.extract_strided_slice %1 {offsets = [1, 0], sizes = [1, 32], strides = [1, 1]} : vector<2x96xf32> to vector<1x32xf32>
    %4 = vector.extract_strided_slice %1 {offsets = [1, 32], sizes = [1, 32], strides = [1, 1]} : vector<2x96xf32> to vector<1x32xf32>
    %5 = vector.extract_strided_slice %1 {offsets = [1, 64], sizes = [1, 32], strides = [1, 1]} : vector<2x96xf32> to vector<1x32xf32>
    %cst = arith.constant dense<0.000000e+00> : vector<16xf32>
    %6 = vector.multi_reduction <add>, %0, %cst [1] : vector<16x32xf32> to vector<16xf32>
    %7 = vector.shape_cast %6 : vector<16xf32> to vector<16x1xf32>
    %cst_3 = arith.constant 3.200000e+01 : f32
    %8 = vector.broadcast %cst_3 : f32 to vector<16x1xf32>
    %9 = arith.divf %7, %8 : vector<16x1xf32>
    %10 = vector.broadcast %9 : vector<16x1xf32> to vector<16x32xf32>
    %11 = arith.subf %0, %10 : vector<16x32xf32>
    %12 = arith.mulf %11, %11 : vector<16x32xf32>
    %cst_4 = arith.constant dense<0.000000e+00> : vector<16xf32>
    %13 = vector.multi_reduction <add>, %12, %cst_4 [1] : vector<16x32xf32> to vector<16xf32>
    %14 = vector.shape_cast %13 : vector<16xf32> to vector<16x1xf32>
    %cst_5 = arith.constant 3.200000e+01 : f32
    %15 = vector.broadcast %cst_5 : f32 to vector<16x1xf32>
    %16 = arith.divf %14, %15 : vector<16x1xf32>
    %17 = vector.broadcast %9 : vector<16x1xf32> to vector<16x32xf32>
    %18 = arith.subf %0, %17 : vector<16x32xf32>
    %cst_6 = arith.constant 9.99999974E-6 : f32
    %19 = vector.broadcast %cst_6 : f32 to vector<16x1xf32>
    %20 = arith.addf %16, %19 : vector<16x1xf32>
    %21 = math.rsqrt %20 : vector<16x1xf32>
    %22 = vector.broadcast %21 : vector<16x1xf32> to vector<16x32xf32>
    %23 = arith.mulf %18, %22 : vector<16x32xf32>
    %24 = vector.broadcast %3 : vector<1x32xf32> to vector<16x32xf32>
    %25 = arith.mulf %23, %24 : vector<16x32xf32>
    %26 = vector.broadcast %4 : vector<1x32xf32> to vector<16x32xf32>
    %27 = arith.addf %25, %26 : vector<16x32xf32>
    %c0_7 = arith.constant 0 : index
    %c0_8 = arith.constant 0 : index
    %28 = vector.load %arg1[%c0_7, %c0_8] : memref<32x96xf32, #tpu.memory_space<vmem>>, vector<32x96xf32>
    %cst_9 = arith.constant dense<0.000000e+00> : vector<16x96xf32>
    %29 = tpu.matmul %27, %28, %cst_9 {dimension_numbers = #tpu.dot_dimension_numbers<[1], [0], [0], [1], [0, 0, 1, 1], [], []>} : vector<16x32xf32>, vector<32x96xf32>, vector<16x96xf32> -> vector<16x96xf32>
    %30 = vector.broadcast %2 : vector<1x96xf32> to vector<16x96xf32>
    %31 = arith.addf %29, %30 : vector<16x96xf32>
    %32 = vector.extract_strided_slice %31 {offsets = [0, 0], sizes = [16, 32], strides = [1, 1]} : vector<16x96xf32> to vector<16x32xf32>
    %33 = vector.shape_cast %32 : vector<16x32xf32> to vector<64x8xf32>
    %34 = vector.extract_strided_slice %31 {offsets = [0, 32], sizes = [16, 32], strides = [1, 1]} : vector<16x96xf32> to vector<16x32xf32>
    %35 = vector.shape_cast %34 : vector<16x32xf32> to vector<64x8xf32>
    %36 = vector.extract_strided_slice %31 {offsets = [0, 64], sizes = [16, 32], strides = [1, 1]} : vector<16x96xf32> to vector<16x32xf32>
    %37 = vector.shape_cast %36 : vector<16x32xf32> to vector<64x8xf32>
    %38 = tpu.transpose %35, [1, 0] : vector<64x8xf32> -> vector<8x64xf32>
    %cst_10 = arith.constant dense<0.000000e+00> : vector<64x64xf32>
    %39 = tpu.matmul %33, %38, %cst_10 {dimension_numbers = #tpu.dot_dimension_numbers<[1], [0], [0], [1], [0, 0, 1, 1], [], []>} : vector<64x8xf32>, vector<8x64xf32>, vector<64x64xf32> -> vector<64x64xf32>
    %c0_11 = arith.constant 0 : index
    %c0_12 = arith.constant 0 : index
    %40 = vector.load %arg4[%c0_11, %c0_12] : memref<64x64xf32, #tpu.memory_space<vmem>>, vector<64x64xf32>
    %41 = arith.addf %39, %40 : vector<64x64xf32>
    %cst_13 = arith.constant dense<0xFF800000> : vector<64xf32>
    %42 = vector.multi_reduction <maximumf>, %41, %cst_13 [1] : vector<64x64xf32> to vector<64xf32>
    %43 = vector.shape_cast %42 : vector<64xf32> to vector<64x1xf32>
    %44 = vector.broadcast %43 : vector<64x1xf32> to vector<64x64xf32>
    %45 = arith.subf %41, %44 : vector<64x64xf32>
    %46 = math.exp %45 : vector<64x64xf32>
    %cst_14 = arith.constant dense<0.000000e+00> : vector<64xf32>
    %47 = vector.multi_reduction <add>, %46, %cst_14 [1] : vector<64x64xf32> to vector<64xf32>
    %48 = vector.shape_cast %47 : vector<64xf32> to vector<64x1xf32>
    %49 = tpu.reciprocal %48 {approx = true} : vector<64x1xf32> -> vector<64x1xf32>
    %50 = vector.broadcast %49 : vector<64x1xf32> to vector<64x64xf32>
    %51 = arith.mulf %46, %50 : vector<64x64xf32>
    %cst_15 = arith.constant dense<0.000000e+00> : vector<64x8xf32>
    %52 = tpu.matmul %51, %37, %cst_15 {dimension_numbers = #tpu.dot_dimension_numbers<[1], [0], [0], [1], [0, 0, 1, 1], [], []>} : vector<64x64xf32>, vector<64x8xf32>, vector<64x8xf32> -> vector<64x8xf32>
    %53 = vector.shape_cast %52 : vector<64x8xf32> to vector<16x32xf32>
    %c0_16 = arith.constant 0 : index
    %c0_17 = arith.constant 0 : index
    %54 = vector.load %arg2[%c0_16, %c0_17] : memref<32x32xf32, #tpu.memory_space<vmem>>, vector<32x32xf32>
    %cst_18 = arith.constant dense<0.000000e+00> : vector<16x32xf32>
    %55 = tpu.matmul %53, %54, %cst_18 {dimension_numbers = #tpu.dot_dimension_numbers<[1], [0], [0], [1], [0, 0, 1, 1], [], []>} : vector<16x32xf32>, vector<32x32xf32>, vector<16x32xf32> -> vector<16x32xf32>
    %56 = vector.broadcast %5 : vector<1x32xf32> to vector<16x32xf32>
    %57 = arith.addf %55, %56 : vector<16x32xf32>
    %58 = arith.addf %57, %0 : vector<16x32xf32>
    %c0_19 = arith.constant 0 : index
    %c0_20 = arith.constant 0 : index
    %59 = vector.load %arg5[%c0_19, %c0_20] : memref<16x32xf32, #tpu.memory_space<vmem>>, vector<16x32xf32>
    tpu.vector_store %arg5[%c0_19, %c0_20], %58 {strides = array<i32>} : memref<16x32xf32, #tpu.memory_space<vmem>>, vector<16x32xf32>,
    return
  }
}

module attributes {stable_mosaic.version = 11 : i64} {
  func.func @kernel(%arg0: memref<16x32xf32, #tpu.memory_space<vmem>>, %arg1: memref<32x96xf32, #tpu.memory_space<vmem>>, %arg2: memref<32x32xf32, #tpu.memory_space<vmem>>, %arg3: memref<2x96xf32, #tpu.memory_space<vmem>>, %arg4: memref<64x64xf32, #tpu.memory_space<vmem>>, %arg5: memref<16x32xf32, #tpu.memory_space<vmem>>) attributes {dimension_semantics = [], scalar_prefetch = 0 : i64, scratch_operands = 0 : i64, tpu.core_type = #tpu.core_type<tc>} {
    %c0 = arith.constant 0 : index
    %c0_0 = arith.constant 0 : index
    %0 = vector.load %arg0[%c0, %c0_0] : memref<16x32xf32, #tpu.memory_space<vmem>>, vector<16x32xf32>
    %c0_1 = arith.constant 0 : index
    %c0_2 = arith.constant 0 : index
    %1 = vector.load %arg3[%c0_1, %c0_2] : memref<2x96xf32, #tpu.memory_space<vmem>>, vector<2x96xf32>
    %2 = vector.extract_strided_slice %1 {offsets = [0, 0], sizes = [1, 96], strides = [1, 1]} : vector<2x96xf32> to vector<1x96xf32>
    %3 = vector.extract_strided_slice %1 {offsets = [1, 0], sizes = [1, 32], strides = [1, 1]} : vector<2x96xf32> to vector<1x32xf32>
    %4 = vector.extract_strided_slice %1 {offsets = [1, 32], sizes = [1, 32], strides = [1, 1]} : vector<2x96xf32> to vector<1x32xf32>
    %5 = vector.extract_strided_slice %1 {offsets = [1, 64], sizes = [1, 32], strides = [1, 1]} : vector<2x96xf32> to vector<1x32xf32>
    %cst = arith.constant dense<0.000000e+00> : vector<16xf32>
    %6 = vector.multi_reduction <add>, %0, %cst [1] : vector<16x32xf32> to vector<16xf32>
    %7 = vector.shape_cast %6 : vector<16xf32> to vector<16x1xf32>
    %cst_3 = arith.constant 3.200000e+01 : f32
    %8 = vector.broadcast %cst_3 : f32 to vector<16x1xf32>
    %9 = arith.divf %7, %8 : vector<16x1xf32>
    %10 = vector.broadcast %9 : vector<16x1xf32> to vector<16x32xf32>
    %11 = arith.subf %0, %10 : vector<16x32xf32>
    %12 = arith.mulf %11, %11 : vector<16x32xf32>
    %cst_4 = arith.constant dense<0.000000e+00> : vector<16xf32>
    %13 = vector.multi_reduction <add>, %12, %cst_4 [1] : vector<16x32xf32> to vector<16xf32>
    %14 = vector.shape_cast %13 : vector<16xf32> to vector<16x1xf32>
    %cst_5 = arith.constant 3.200000e+01 : f32
    %15 = vector.broadcast %cst_5 : f32 to vector<16x1xf32>
    %16 = arith.divf %14, %15 : vector<16x1xf32>
    %17 = vector.broadcast %9 : vector<16x1xf32> to vector<16x32xf32>
    %18 = arith.subf %0, %17 : vector<16x32xf32>
    %cst_6 = arith.constant 9.99999974E-6 : f32
    %19 = vector.broadcast %cst_6 : f32 to vector<16x1xf32>
    %20 = arith.addf %16, %19 : vector<16x1xf32>
    %21 = math.rsqrt %20 : vector<16x1xf32>
    %22 = vector.broadcast %21 : vector<16x1xf32> to vector<16x32xf32>
    %23 = arith.mulf %18, %22 : vector<16x32xf32>
    %24 = vector.broadcast %3 : vector<1x32xf32> to vector<16x32xf32>
    %25 = arith.mulf %23, %24 : vector<16x32xf32>
    %26 = vector.broadcast %4 : vector<1x32xf32> to vector<16x32xf32>
    %27 = arith.addf %25, %26 : vector<16x32xf32>
    %c0_7 = arith.constant 0 : index
    %c0_8 = arith.constant 0 : index
    %28 = vector.load %arg1[%c0_7, %c0_8] : memref<32x96xf32, #tpu.memory_space<vmem>>, vector<32x96xf32>
    %cst_9 = arith.constant dense<0.000000e+00> : vector<16x96xf32>
    %29 = tpu.matmul %27, %28, %cst_9 {dimension_numbers = #tpu.dot_dimension_numbers<[1], [0], [0], [1], [0, 0, 1, 1], [], []>} : vector<16x32xf32>, vector<32x96xf32>, vector<16x96xf32> -> vector<16x96xf32>
    %30 = vector.broadcast %2 : vector<1x96xf32> to vector<16x96xf32>
    %31 = arith.addf %29, %30 : vector<16x96xf32>
    %32 = vector.extract_strided_slice %31 {offsets = [0, 0], sizes = [16, 32], strides = [1, 1]} : vector<16x96xf32> to vector<16x32xf32>
    %33 = vector.extract_strided_slice %32 {offsets = [0, 0], sizes = [16, 8], strides = [1, 1]} : vector<16x32xf32> to vector<16x8xf32>
    %34 = vector.extract_strided_slice %32 {offsets = [0, 8], sizes = [16, 8], strides = [1, 1]} : vector<16x32xf32> to vector<16x8xf32>
    %35 = vector.extract_strided_slice %32 {offsets = [0, 16], sizes = [16, 8], strides = [1, 1]} : vector<16x32xf32> to vector<16x8xf32>
    %36 = vector.extract_strided_slice %32 {offsets = [0, 24], sizes = [16, 8], strides = [1, 1]} : vector<16x32xf32> to vector<16x8xf32>
    %37 = tpu.concatenate %33, %34, %35, %36 in 0 : vector<16x8xf32>, vector<16x8xf32>, vector<16x8xf32>, vector<16x8xf32> -> vector<64x8xf32>
    %38 = vector.extract_strided_slice %31 {offsets = [0, 32], sizes = [16, 32], strides = [1, 1]} : vector<16x96xf32> to vector<16x32xf32>
    %39 = vector.extract_strided_slice %38 {offsets = [0, 0], sizes = [16, 8], strides = [1, 1]} : vector<16x32xf32> to vector<16x8xf32>
    %40 = vector.extract_strided_slice %38 {offsets = [0, 8], sizes = [16, 8], strides = [1, 1]} : vector<16x32xf32> to vector<16x8xf32>
    %41 = vector.extract_strided_slice %38 {offsets = [0, 16], sizes = [16, 8], strides = [1, 1]} : vector<16x32xf32> to vector<16x8xf32>
    %42 = vector.extract_strided_slice %38 {offsets = [0, 24], sizes = [16, 8], strides = [1, 1]} : vector<16x32xf32> to vector<16x8xf32>
    %43 = tpu.concatenate %39, %40, %41, %42 in 0 : vector<16x8xf32>, vector<16x8xf32>, vector<16x8xf32>, vector<16x8xf32> -> vector<64x8xf32>
    %44 = vector.extract_strided_slice %31 {offsets = [0, 64], sizes = [16, 32], strides = [1, 1]} : vector<16x96xf32> to vector<16x32xf32>
    %45 = vector.extract_strided_slice %44 {offsets = [0, 0], sizes = [16, 8], strides = [1, 1]} : vector<16x32xf32> to vector<16x8xf32>
    %46 = vector.extract_strided_slice %44 {offsets = [0, 8], sizes = [16, 8], strides = [1, 1]} : vector<16x32xf32> to vector<16x8xf32>
    %47 = vector.extract_strided_slice %44 {offsets = [0, 16], sizes = [16, 8], strides = [1, 1]} : vector<16x32xf32> to vector<16x8xf32>
    %48 = vector.extract_strided_slice %44 {offsets = [0, 24], sizes = [16, 8], strides = [1, 1]} : vector<16x32xf32> to vector<16x8xf32>
    %49 = tpu.concatenate %45, %46, %47, %48 in 0 : vector<16x8xf32>, vector<16x8xf32>, vector<16x8xf32>, vector<16x8xf32> -> vector<64x8xf32>
    %50 = tpu.transpose %43, [1, 0] : vector<64x8xf32> -> vector<8x64xf32>
    %cst_10 = arith.constant dense<0.000000e+00> : vector<64x64xf32>
    %51 = tpu.matmul %37, %50, %cst_10 {dimension_numbers = #tpu.dot_dimension_numbers<[1], [0], [0], [1], [0, 0, 1, 1], [], []>} : vector<64x8xf32>, vector<8x64xf32>, vector<64x64xf32> -> vector<64x64xf32>
    %c0_11 = arith.constant 0 : index
    %c0_12 = arith.constant 0 : index
    %52 = vector.load %arg4[%c0_11, %c0_12] : memref<64x64xf32, #tpu.memory_space<vmem>>, vector<64x64xf32>
    %53 = arith.addf %51, %52 : vector<64x64xf32>
    %cst_13 = arith.constant dense<0xFF800000> : vector<64xf32>
    %54 = vector.multi_reduction <maximumf>, %53, %cst_13 [1] : vector<64x64xf32> to vector<64xf32>
    %55 = vector.shape_cast %54 : vector<64xf32> to vector<64x1xf32>
    %56 = vector.broadcast %55 : vector<64x1xf32> to vector<64x64xf32>
    %57 = arith.subf %53, %56 : vector<64x64xf32>
    %58 = math.exp %57 : vector<64x64xf32>
    %cst_14 = arith.constant dense<0.000000e+00> : vector<64xf32>
    %59 = vector.multi_reduction <add>, %58, %cst_14 [1] : vector<64x64xf32> to vector<64xf32>
    %60 = vector.shape_cast %59 : vector<64xf32> to vector<64x1xf32>
    %61 = tpu.reciprocal %60 {approx = true} : vector<64x1xf32> -> vector<64x1xf32>
    %62 = vector.broadcast %61 : vector<64x1xf32> to vector<64x64xf32>
    %63 = arith.mulf %58, %62 : vector<64x64xf32>
    %cst_15 = arith.constant dense<0.000000e+00> : vector<64x8xf32>
    %64 = tpu.matmul %63, %49, %cst_15 {dimension_numbers = #tpu.dot_dimension_numbers<[1], [0], [0], [1], [0, 0, 1, 1], [], []>} : vector<64x64xf32>, vector<64x8xf32>, vector<64x8xf32> -> vector<64x8xf32>
    %65 = vector.extract_strided_slice %64 {offsets = [0, 0], sizes = [16, 8], strides = [1, 1]} : vector<64x8xf32> to vector<16x8xf32>
    %66 = vector.extract_strided_slice %64 {offsets = [16, 0], sizes = [16, 8], strides = [1, 1]} : vector<64x8xf32> to vector<16x8xf32>
    %67 = vector.extract_strided_slice %64 {offsets = [32, 0], sizes = [16, 8], strides = [1, 1]} : vector<64x8xf32> to vector<16x8xf32>
    %68 = vector.extract_strided_slice %64 {offsets = [48, 0], sizes = [16, 8], strides = [1, 1]} : vector<64x8xf32> to vector<16x8xf32>
    %69 = tpu.concatenate %65, %66, %67, %68 in 1 : vector<16x8xf32>, vector<16x8xf32>, vector<16x8xf32>, vector<16x8xf32> -> vector<16x32xf32>
    %c0_16 = arith.constant 0 : index
    %c0_17 = arith.constant 0 : index
    %70 = vector.load %arg2[%c0_16, %c0_17] : memref<32x32xf32, #tpu.memory_space<vmem>>, vector<32x32xf32>
    %cst_18 = arith.constant dense<0.000000e+00> : vector<16x32xf32>
    %71 = tpu.matmul %69, %70, %cst_18 {dimension_numbers = #tpu.dot_dimension_numbers<[1], [0], [0], [1], [0, 0, 1, 1], [], []>} : vector<16x32xf32>, vector<32x32xf32>, vector<16x32xf32> -> vector<16x32xf32>
    %72 = vector.broadcast %5 : vector<1x32xf32> to vector<16x32xf32>
    %73 = arith.addf %71, %72 : vector<16x32xf32>
    %74 = arith.addf %73, %0 : vector<16x32xf32>
    %c0_19 = arith.constant 0 : index
    %c0_20 = arith.constant 0 : index
    %75 = vector.load %arg5[%c0_19, %c0_20] : memref<16x32xf32, #tpu.memory_space<vmem>>, vector<16x32xf32>
    tpu.vector_store %arg5[%c0_19, %c0_20], %74 {strides = array<i32>} : memref<16x32xf32, #tpu.memory_space<vmem>>, vector<16x32xf32>,
    return
  }
}

</mosaic_0001>

<llo_original>
// kernel: tpu_custom_call.1
$region0: #{tpu_custom_call.1}
  #allocation0 [shape = 'u32[]', space=smem, size = 0x4, offset = 0x4, fixed_abs, tag = 'smem constant byte address 0x4 - core index']
  #allocation1 [shape = 'u32[72,128]{1,0:T(1,128)}', space=vmem, size = 0x9000, scoped, tag = 'internal scratch']
  %s0 = inlined_call_operand.hbm [shape: f32[16,32], index: 0, kind: input, shape index: {}, may-alias: {0,5}]
  %s1 = inlined_call_operand.vmem [shape: f32[32,96], index: 1, kind: input, shape index: {}]
  %s2 = inlined_call_operand.hbm [shape: f32[32,32], index: 2, kind: input, shape index: {}]
  %s3 = inlined_call_operand.vmem [shape: f32[2,96], index: 3, kind: input, shape index: {}]
  %s4 = inlined_call_operand.hbm [shape: f32[64,64], index: 4, kind: input, shape index: {}]
  %s5 = inlined_call_operand.hbm [shape: f32[16,32], index: 5, kind: output, shape index: {}, may-alias: {0,5}]
  %s6 = sld [smem:[#allocation0]]
  $region42: #{tpu_custom_call.1} parent=0
    _
  %s8 = ssub.s32 1, %s6
  %s9 = scalar_select 0, %s8, %s6
  $region1: #{tpu_custom_call.1} parent=0
    #allocation2 [shape = 'u8[8192]{0}', space=vmem, size = 0x2000, scoped, tag = 'input window, operand 0, single buffered']
    #allocation3 [shape = 's32[1]{0}', space=sflag, size = 0x4, scoped, tag = 'scoped memory for tpu_custom_call.1']
    #allocation4 [shape = 's32[1]{0}', space=sflag, size = 0x4, scoped, tag = 'scoped memory for tpu_custom_call.1']
    #allocation5 [shape = 'u8[16384]{0}', space=vmem, size = 0x4000, scoped, tag = 'input window, operand 2, single buffered']
    #allocation6 [shape = 's32[1]{0}', space=sflag, size = 0x4, scoped, tag = 'scoped memory for tpu_custom_call.1']
    #allocation7 [shape = 'u8[32768]{0}', space=vmem, size = 0x8000, scoped, tag = 'input window, operand 4, single buffered']
    #allocation8 [shape = 'u8[8192]{0}', space=vmem, size = 0x2000, scoped, tag = 'output window, operand 0, single buffered']
    %10 = vsyncpa [#allocation3], 0
    %11 = vsyncpa [#allocation6], 0
    %12 = vsyncpa [#allocation4], 0
    // Predicated region
    $region2: #{tpu_custom_call.1} parent=1 // pred_check
      _
    $region3: #{tpu_custom_call.1} parent=1 // pred_check_branch
      %14 = sbr.rel (0) target = $region5
    $region4: #{tpu_custom_call.1} parent=1 // pred_region
      %16 = vsyncadd [#allocation3], 0
      %s17 = sshll.u32 %s0, 4
      %s18 = int_to_ptr.hbm [resolvable:$true] %s17
      %s19 = sshll.u32 [#allocation2], 4
      %s20 = int_to_ptr.vmem [resolvable:$true] %s19
      %25 = dma.hbm_to_vmem [thread:$0]  %s18, 256, %s20, [#allocation3], 128, 128, 8
    $region5: #{tpu_custom_call.1} parent=1 // pred_fallthru
      _
    // Predicated region
    $region6: #{tpu_custom_call.1} parent=1 // pred_check
      _
    $region7: #{tpu_custom_call.1} parent=1 // pred_check_branch
      %27 = sbr.rel (0) target = $region9
    $region8: #{tpu_custom_call.1} parent=1 // pred_region
      _
    $region9: #{tpu_custom_call.1} parent=1 // pred_fallthru
      _
    // Predicated region
    $region10: #{tpu_custom_call.1} parent=1 // pred_check
      _
    $region11: #{tpu_custom_call.1} parent=1 // pred_check_branch
      %29 = sbr.rel (0) target = $region13
    $region12: #{tpu_custom_call.1} parent=1 // pred_region
      %31 = vsyncadd [#allocation6], 0
      %s32 = sshll.u32 %s2, 4
      %s33 = int_to_ptr.hbm [resolvable:$true] %s32
      %s34 = sshll.u32 [#allocation5], 4
      %s35 = int_to_ptr.vmem [resolvable:$true] %s34
      %40 = dma.hbm_to_vmem [thread:$0]  %s33, 512, %s35, [#allocation6], 128, 128, 8
    $region13: #{tpu_custom_call.1} parent=1 // pred_fallthru
      _
    // Predicated region
    $region14: #{tpu_custom_call.1} parent=1 // pred_check
      _
    $region15: #{tpu_custom_call.1} parent=1 // pred_check_branch
      %42 = sbr.rel (0) target = $region17
    $region16: #{tpu_custom_call.1} parent=1 // pred_region
      _
    $region17: #{tpu_custom_call.1} parent=1 // pred_fallthru
      _
    // Predicated region
    $region18: #{tpu_custom_call.1} parent=1 // pred_check
      _
    $region19: #{tpu_custom_call.1} parent=1 // pred_check_branch
      %44 = sbr.rel (0) target = $region21
    $region20: #{tpu_custom_call.1} parent=1 // pred_region
      %46 = vsyncadd [#allocation6], 0
      %s47 = sshll.u32 %s4, 4
      %s48 = int_to_ptr.hbm [resolvable:$true] %s47
      %s49 = sshll.u32 [#allocation7], 4
      %s50 = int_to_ptr.vmem [resolvable:$true] %s49
      %55 = dma.hbm_to_vmem [thread:$0]  %s48, 1024, %s50, [#allocation6], 128, 128, 8
    $region21: #{tpu_custom_call.1} parent=1 // pred_fallthru
      _
    // Predicated region
    $region22: #{tpu_custom_call.1} parent=1 // pred_check
      _
    $region23: #{tpu_custom_call.1} parent=1 // pred_check_branch
      %57 = sbr.rel (0) target = $region25
    $region24: #{tpu_custom_call.1} parent=1 // pred_region
      %59 = dma.done [#allocation3], 256
    $region25: #{tpu_custom_call.1} parent=1 // pred_fallthru
      _
    // Predicated region
    $region26: #{tpu_custom_call.1} parent=1 // pred_check
      _
    $region27: #{tpu_custom_call.1} parent=1 // pred_check_branch
      %61 = sbr.rel (0) target = $region29
    $region28: #{tpu_custom_call.1} parent=1 // pred_region
      %63 = dma.done [#allocation6], 512
    $region29: #{tpu_custom_call.1} parent=1 // pred_fallthru
      _
    // Predicated region
    $region30: #{tpu_custom_call.1} parent=1 // pred_check
      _
    $region31: #{tpu_custom_call.1} parent=1 // pred_check_branch
      %65 = sbr.rel (0) target = $region33
    $region32: #{tpu_custom_call.1} parent=1 // pred_region
      %67 = dma.done [#allocation6], 1024
    $region33: #{tpu_custom_call.1} parent=1 // pred_fallthru
      _
    %v68 = vld [vmem:[#allocation2] sm:$0xff]
    %v69 = vld [vmem:[#allocation2 + $0x8] sm:$0xff]
    %v70 = vld [vmem:[%s3] sm:$0x3]
    %vm71 = vcmask 261120
    %v72 = vsel %vm71, %v68, 0.0
    %73 = vadd.xlane.f32.xlu0 %v72
    %v74 = vpop.xlane.xlu0 %73
    %v75 = vsel %vm71, %v69, 0.0
    %76 = vadd.xlane.f32.xlu0 %v75
    %v77 = vpop.xlane.xlu0 %76
    %v78 = vrcp.pop 32.0
    %v79 = vmul.f32 32.0, %v78
    %v80 = vsub.f32 1.0, %v79
    %v81 = vmul.f32 %v78, %v80
    %v82 = vadd.f32 %v78, %v81
    %vm83 = vweird.f32 %v78
    %v84 = vsel %vm83, %v78, %v82
    %v85 = vmul.f32 %v74, %v84
    %v86 = vmul.f32 %v77, %v84
    %v87 = vsub.f32 %v68, %v85
    %v88 = vsub.f32 %v69, %v86
    %v89 = vmul.f32 %v87, %v87
    %v90 = vmul.f32 %v88, %v88
    %v91 = vsel %vm71, %v89, 0.0
    %92 = vadd.xlane.f32.xlu0 %v91
    %v93 = vpop.xlane.xlu0 %92
    %v94 = vsel %vm71, %v90, 0.0
    %95 = vadd.xlane.f32.xlu0 %v94
    %v96 = vpop.xlane.xlu0 %95
    %v97 = vmul.f32 %v93, %v84
    %v98 = vmul.f32 %v96, %v84
    %v99 = vadd.f32 %v97, 1e-05
    %v100 = vadd.f32 %v98, 1e-05
    %v101 = vrsqrt.pop %v99
    %v102 = vmul.f32 %v101, %v99
    %v103 = vmul.f32 %v102, %v101
    %v104 = vmul.f32 0.5, %v103
    %v105 = vsub.f32 1.5, %v104
    %v106 = vmul.f32 %v101, %v105
    %vm107 = vweird.f32 %v99
    %vm108 = vweird.f32 %v101
    %vm109 = vmor %vm107, %vm108
    %v110 = vsel %vm109, %v101, %v106
    %v111 = vrsqrt.pop %v100
    %v112 = vmul.f32 %v111, %v100
    %v113 = vmul.f32 %v112, %v111
    %v114 = vmul.f32 0.5, %v113
    %v115 = vsub.f32 1.5, %v114
    %v116 = vmul.f32 %v111, %v115
    %vm117 = vweird.f32 %v100
    %vm118 = vweird.f32 %v111
    %vm119 = vmor %vm117, %vm118
    %v120 = vsel %vm119, %v111, %v116
    %v121 = vmul.f32 %v87, %v110
    %v122 = vmul.f32 %v88, %v120
    %v123 = vperm.slane %v70, 1
    %v124 = vmul.f32 %v121, %v123
    %v125 = vmul.f32 %v122, %v123
    %127 = vrot.lane.b32.xlu0 %v123, 96
    %v128 = vpop.permute.xlu0 %127
    %v130 = vadd.f32 %v124, %v128
    %v131 = vadd.f32 %v125, %v128
    %v132 = vld [vmem:[%s1] sm:$0xff]
    %v133 = vld [vmem:[%s1 + $0x8] sm:$0xff]
    %v134 = vld [vmem:[%s1 + $0x10] sm:$0xff]
    %v135 = vld [vmem:[%s1 + $0x18] sm:$0xff]
    %v136 = vperm.slane %v70, 0
    %v138 = vsel %vm71, %v130, 0
    %v141 = vsel %vm71, %v131, 0
    %143 = vmatpush.msra.mxu0 0.0
    %144 = vmatpush.msra.mxu0 0.0
    %145 = vmatpush.msra.mxu0 0.0
    %146 = vmatpush.msra.mxu0 0.0
    %147 = vmatpush.msra.mxu0 0.0
    %148 = vmatpush.msra.mxu0 0.0
    %149 = vmatpush.msra.mxu0 0.0
    %150 = vmatpush.msra.mxu0 0.0
    %151 = vmatpush.msra.mxu0 0.0
    %152 = vmatpush.msra.mxu0 0.0
    %153 = vmatpush.msra.mxu0 0.0
    %154 = vmatpush.msra.mxu0 0.0
    %155 = vmatpush.msra.mxu0 %v135
    %156 = vmatpush.msra.mxu0 %v134
    %157 = vmatpush.msra.mxu0 %v133
    %158 = vmatpush.msra.mxu0 %v132
    %159 = vmatmul.f32.gmra.mxu0 %v138
    %v160 = vpop.f32.mrf.mxu0
    %v161 = vadd.f32 %v136, %v160
    %162 = vmatmul.f32.gmra.mxu0 %v141
    %v163 = vpop.f32.mrf.mxu0
    %v164 = vadd.f32 %v136, %v163
    %165 = vdwg.mxu0
    %168 = vrot.lane.b32.xlu0 %v161, 120
    %v169 = vpop.permute.xlu0 %168
    %170 = vrot.lane.b32.xlu0 %v164, 120
    %v171 = vpop.permute.xlu0 %170
    %172 = vrot.lane.b32.xlu0 %v161, 112
    %v173 = vpop.permute.xlu0 %172
    %174 = vrot.lane.b32.xlu0 %v164, 112
    %v175 = vpop.permute.xlu0 %174
    %176 = vrot.lane.b32.xlu0 %v161, 104
    %v177 = vpop.permute.xlu0 %176
    %178 = vrot.lane.b32.xlu0 %v164, 104
    %v179 = vpop.permute.xlu0 %178
    %v180 = vld [vmem:[#allocation7] sm:$0xff]
    %v181 = vld [vmem:[#allocation7 + $0x8] sm:$0xff]
    %v182 = vld [vmem:[#allocation7 + $0x10] sm:$0xff]
    %v183 = vld [vmem:[#allocation7 + $0x18] sm:$0xff]
    %v184 = vld [vmem:[#allocation7 + $0x20] sm:$0xff]
    %v185 = vld [vmem:[#allocation7 + $0x28] sm:$0xff]
    %v186 = vld [vmem:[#allocation7 + $0x30] sm:$0xff]
    %v187 = vld [vmem:[#allocation7 + $0x38] sm:$0xff]
    %188 = vrot.lane.b32.xlu0 %v161, 96
    %v189 = vpop.permute.xlu0 %188
    %190 = vrot.lane.b32.xlu0 %v164, 96
    %v191 = vpop.permute.xlu0 %190
    %192 = vrot.lane.b32.xlu0 %v169, 96
    %v193 = vpop.permute.xlu0 %192
    %194 = vrot.lane.b32.xlu0 %v171, 96
    %v195 = vpop.permute.xlu0 %194
    %196 = vrot.lane.b32.xlu0 %v173, 96
    %v197 = vpop.permute.xlu0 %196
    %198 = vrot.lane.b32.xlu0 %v175, 96
    %v199 = vpop.permute.xlu0 %198
    %200 = vrot.lane.b32.xlu0 %v177, 96
    %v201 = vpop.permute.xlu0 %200
    %202 = vrot.lane.b32.xlu0 %v179, 96
    %v203 = vpop.permute.xlu0 %202
    %vm204 = vcmask 64512
    %v205 = vsel %vm204, %v161, 0
    %v207 = vsel %vm204, %v164, 0
    %v209 = vsel %vm204, %v169, 0
    %v211 = vsel %vm204, %v171, 0
    %v213 = vsel %vm204, %v173, 0
    %v215 = vsel %vm204, %v175, 0
    %v217 = vsel %vm204, %v177, 0
    %v219 = vsel %vm204, %v179, 0
    %v221 = vsel %vm204, %v189, 0
    %v223 = vsel %vm204, %v191, 0
    %v225 = vsel %vm204, %v193, 0
    %v227 = vsel %vm204, %v195, 0
    %v229 = vsel %vm204, %v197, 0
    %v231 = vsel %vm204, %v199, 0
    %v233 = vsel %vm204, %v201, 0
    %v235 = vsel %vm204, %v203, 0
    %237 = vmatpush.xpose.msra.mxu0 0.0
    %238 = vmatpush.xpose.msra.mxu0 0.0
    %239 = vmatpush.xpose.msra.mxu0 0.0
    %240 = vmatpush.xpose.msra.mxu0 0.0
    %241 = vmatpush.xpose.msra.mxu0 0.0
    %242 = vmatpush.xpose.msra.mxu0 0.0
    %243 = vmatpush.xpose.msra.mxu0 0.0
    %244 = vmatpush.xpose.msra.mxu0 0.0
    %245 = vmatpush.xpose.msra.mxu0 %v235
    %246 = vmatpush.xpose.msra.mxu0 %v233
    %247 = vmatpush.xpose.msra.mxu0 %v231
    %248 = vmatpush.xpose.msra.mxu0 %v229
    %249 = vmatpush.xpose.msra.mxu0 %v227
    %250 = vmatpush.xpose.msra.mxu0 %v225
    %251 = vmatpush.xpose.msra.mxu0 %v223
    %252 = vmatpush.xpose.msra.mxu0 %v221
    %253 = vmatmul.f32.gmra.mxu0 %v205
    %v254 = vpop.f32.mrf.mxu0
    %v255 = vadd.f32 %v180, %v254
    %256 = vmatmul.f32.gmra.mxu0 %v207
    %v257 = vpop.f32.mrf.mxu0
    %v258 = vadd.f32 %v181, %v257
    %259 = vmatmul.f32.gmra.mxu0 %v209
    %v260 = vpop.f32.mrf.mxu0
    %v261 = vadd.f32 %v182, %v260
    %262 = vmatmul.f32.gmra.mxu0 %v211
    %v263 = vpop.f32.mrf.mxu0
    %v264 = vadd.f32 %v183, %v263
    %265 = vmatmul.f32.gmra.mxu0 %v213
    %v266 = vpop.f32.mrf.mxu0
    %v267 = vadd.f32 %v184, %v266
    %268 = vmatmul.f32.gmra.mxu0 %v215
    %v269 = vpop.f32.mrf.mxu0
    %v270 = vadd.f32 %v185, %v269
    %271 = vmatmul.f32.gmra.mxu0 %v217
    %v272 = vpop.f32.mrf.mxu0
    %v273 = vadd.f32 %v186, %v272
    %274 = vmatmul.f32.gmra.mxu0 %v219
    %v275 = vpop.f32.mrf.mxu0
    %v276 = vadd.f32 %v187, %v275
    %277 = vdwg.mxu0
    %vm278 = vcmask 523264
    %v279 = vsel %vm278, %v255, -inf
    %280 = vmax.xlane.f32.xlu0 %v279
    %v281 = vpop.xlane.xlu0 %280
    %v282 = vsel %vm278, %v258, -inf
    %283 = vmax.xlane.f32.xlu0 %v282
    %v284 = vpop.xlane.xlu0 %283
    %v285 = vsel %vm278, %v261, -inf
    %286 = vmax.xlane.f32.xlu0 %v285
    %v287 = vpop.xlane.xlu0 %286
    %v288 = vsel %vm278, %v264, -inf
    %289 = vmax.xlane.f32.xlu0 %v288
    %v290 = vpop.xlane.xlu0 %289
    %v291 = vsel %vm278, %v267, -inf
    %292 = vmax.xlane.f32.xlu0 %v291
    %v293 = vpop.xlane.xlu0 %292
    %v294 = vsel %vm278, %v270, -inf
    %295 = vmax.xlane.f32.xlu0 %v294
    %v296 = vpop.xlane.xlu0 %295
    %v297 = vsel %vm278, %v273, -inf
    %298 = vmax.xlane.f32.xlu0 %v297
    %v299 = vpop.xlane.xlu0 %298
    %v300 = vsel %vm278, %v276, -inf
    %301 = vmax.xlane.f32.xlu0 %v300
    %v302 = vpop.xlane.xlu0 %301
    %v303 = vsub.f32 %v255, %v281
    %v304 = vsub.f32 %v258, %v284
    %v305 = vsub.f32 %v261, %v287
    %v306 = vsub.f32 %v264, %v290
    %v307 = vsub.f32 %v267, %v293
    %v308 = vsub.f32 %v270, %v296
    %v309 = vsub.f32 %v273, %v299
    %v310 = vsub.f32 %v276, %v302
    %v311 = vmul.f32 %v303, 1.442695
    %v312 = vpow.pop %v311
    %v313 = vmul.f32 %v304, 1.442695
    %v314 = vpow.pop %v313
    %v315 = vmul.f32 %v305, 1.442695
    %v316 = vpow.pop %v315
    %v317 = vmul.f32 %v306, 1.442695
    %v318 = vpow.pop %v317
    %v319 = vmul.f32 %v307, 1.442695
    %v320 = vpow.pop %v319
    %v321 = vmul.f32 %v308, 1.442695
    %v322 = vpow.pop %v321
    %v323 = vmul.f32 %v309, 1.442695
    %v324 = vpow.pop %v323
    %v325 = vmul.f32 %v310, 1.442695
    %v326 = vpow.pop %v325
    %v327 = vsel %vm278, %v312, 0.0
    %328 = vadd.xlane.f32.xlu0 %v327
    %v329 = vpop.xlane.xlu0 %328
    %v330 = vsel %vm278, %v314, 0.0
    %331 = vadd.xlane.f32.xlu0 %v330
    %v332 = vpop.xlane.xlu0 %331
    %v333 = vsel %vm278, %v316, 0.0
    %334 = vadd.xlane.f32.xlu0 %v333
    %v335 = vpop.xlane.xlu0 %334
    %v336 = vsel %vm278, %v318, 0.0
    %337 = vadd.xlane.f32.xlu0 %v336
    %v338 = vpop.xlane.xlu0 %337
    %v339 = vsel %vm278, %v320, 0.0
    %340 = vadd.xlane.f32.xlu0 %v339
    %v341 = vpop.xlane.xlu0 %340
    %v342 = vsel %vm278, %v322, 0.0
    %343 = vadd.xlane.f32.xlu0 %v342
    %v344 = vpop.xlane.xlu0 %343
    %v345 = vsel %vm278, %v324, 0.0
    %346 = vadd.xlane.f32.xlu0 %v345
    %v347 = vpop.xlane.xlu0 %346
    %v348 = vsel %vm278, %v326, 0.0
    %349 = vadd.xlane.f32.xlu0 %v348
    %v350 = vpop.xlane.xlu0 %349
    %v351 = vrcp.pop %v329
    %v352 = vrcp.pop %v332
    %v353 = vrcp.pop %v335
    %v354 = vrcp.pop %v338
    %v355 = vrcp.pop %v341
    %v356 = vrcp.pop %v344
    %v357 = vrcp.pop %v347
    %v358 = vrcp.pop %v350
    %v359 = vmul.f32 %v312, %v351
    %v360 = vmul.f32 %v314, %v352
    %v361 = vmul.f32 %v316, %v353
    %v362 = vmul.f32 %v318, %v354
    %v363 = vmul.f32 %v320, %v355
    %v364 = vmul.f32 %v322, %v356
    %v365 = vmul.f32 %v324, %v357
    %v366 = vmul.f32 %v326, %v358
    %367 = vrot.lane.b32.xlu0 %v161, 64
    %v368 = vpop.permute.xlu0 %367
    %369 = vrot.lane.b32.xlu0 %v164, 64
    %v370 = vpop.permute.xlu0 %369
    %371 = vrot.lane.b32.xlu0 %v169, 64
    %v372 = vpop.permute.xlu0 %371
    %373 = vrot.lane.b32.xlu0 %v171, 64
    %v374 = vpop.permute.xlu0 %373
    %375 = vrot.lane.b32.xlu0 %v173, 64
    %v376 = vpop.permute.xlu0 %375
    %377 = vrot.lane.b32.xlu0 %v175, 64
    %v378 = vpop.permute.xlu0 %377
    %379 = vrot.lane.b32.xlu0 %v177, 64
    %v380 = vpop.permute.xlu0 %379
    %381 = vrot.lane.b32.xlu0 %v179, 64
    %v382 = vpop.permute.xlu0 %381
    %v392 = vsel %vm278, %v359, 0
    %v395 = vsel %vm278, %v360, 0
    %v398 = vsel %vm278, %v361, 0
    %v401 = vsel %vm278, %v362, 0
    %v404 = vsel %vm278, %v363, 0
    %v407 = vsel %vm278, %v364, 0
    %v410 = vsel %vm278, %v365, 0
    %v413 = vsel %vm278, %v366, 0
    %415 = vmatpush.msra.mxu0 0.0
    %416 = vmatpush.msra.mxu0 0.0
    %417 = vmatpush.msra.mxu0 0.0
    %418 = vmatpush.msra.mxu0 0.0
    %419 = vmatpush.msra.mxu0 0.0
    %420 = vmatpush.msra.mxu0 0.0
    %421 = vmatpush.msra.mxu0 0.0
    %422 = vmatpush.msra.mxu0 0.0
    %423 = vmatpush.msra.mxu0 %v382
    %424 = vmatpush.msra.mxu0 %v380
    %425 = vmatpush.msra.mxu0 %v378
    %426 = vmatpush.msra.mxu0 %v376
    %427 = vmatpush.msra.mxu0 %v374
    %428 = vmatpush.msra.mxu0 %v372
    %429 = vmatpush.msra.mxu0 %v370
    %430 = vmatpush.msra.mxu0 %v368
    %431 = vmatmul.f32.gmra.mxu0 %v392
    %v432 = vpop.f32.mrf.mxu0
    %v433 = vadd.f32 0.0, %v432
    %434 = vmatmul.f32.gmra.mxu0 %v395
    %v435 = vpop.f32.mrf.mxu0
    %v436 = vadd.f32 0.0, %v435
    %437 = vmatmul.f32.gmra.mxu0 %v398
    %v438 = vpop.f32.mrf.mxu0
    %v439 = vadd.f32 0.0, %v438
    %440 = vmatmul.f32.gmra.mxu0 %v401
    %v441 = vpop.f32.mrf.mxu0
    %v442 = vadd.f32 0.0, %v441
    %443 = vmatmul.f32.gmra.mxu0 %v404
    %v444 = vpop.f32.mrf.mxu0
    %v445 = vadd.f32 0.0, %v444
    %446 = vmatmul.f32.gmra.mxu0 %v407
    %v447 = vpop.f32.mrf.mxu0
    %v448 = vadd.f32 0.0, %v447
    %449 = vmatmul.f32.gmra.mxu0 %v410
    %v450 = vpop.f32.mrf.mxu0
    %v451 = vadd.f32 0.0, %v450
    %452 = vmatmul.f32.gmra.mxu0 %v413
    %v453 = vpop.f32.mrf.mxu0
    %v454 = vadd.f32 0.0, %v453
    %455 = vdwg.mxu0
    %458 = vrot.lane.b32.xlu0 %v439, 8
    %v459 = vpop.permute.xlu0 %458
    %460 = vrot.lane.b32.xlu0 %v442, 8
    %v461 = vpop.permute.xlu0 %460
    %466 = vrot.lane.b32.xlu0 %v445, 16
    %v467 = vpop.permute.xlu0 %466
    %468 = vrot.lane.b32.xlu0 %v448, 16
    %v469 = vpop.permute.xlu0 %468
    %474 = vrot.lane.b32.xlu0 %v451, 24
    %v475 = vpop.permute.xlu0 %474
    %476 = vrot.lane.b32.xlu0 %v454, 24
    %v477 = vpop.permute.xlu0 %476
    %v480 = vsel %vm204, %v433, %v459
    %v481 = vsel %vm204, %v436, %v461
    %vm482 = vcmask 130048
    %v483 = vsel %vm482, %v480, %v467
    %v484 = vsel %vm482, %v481, %v469
    %vm485 = vcmask 195584
    %v486 = vsel %vm485, %v483, %v475
    %v487 = vsel %vm485, %v484, %v477
    %v488 = vld [vmem:[#allocation5] sm:$0xff]
    %v489 = vld [vmem:[#allocation5 + $0x8] sm:$0xff]
    %v490 = vld [vmem:[#allocation5 + $0x10] sm:$0xff]
    %v491 = vld [vmem:[#allocation5 + $0x18] sm:$0xff]
    %492 = vrot.lane.b32.xlu0 %v123, 64
    %v493 = vpop.permute.xlu0 %492
    %v496 = vsel %vm71, %v486, 0
    %v499 = vsel %vm71, %v487, 0
    %501 = vmatpush.msra.mxu0 0.0
    %502 = vmatpush.msra.mxu0 0.0
    %503 = vmatpush.msra.mxu0 0.0
    %504 = vmatpush.msra.mxu0 0.0
    %505 = vmatpush.msra.mxu0 0.0
    %506 = vmatpush.msra.mxu0 0.0
    %507 = vmatpush.msra.mxu0 0.0
    %508 = vmatpush.msra.mxu0 0.0
    %509 = vmatpush.msra.mxu0 0.0
    %510 = vmatpush.msra.mxu0 0.0
    %511 = vmatpush.msra.mxu0 0.0
    %512 = vmatpush.msra.mxu0 0.0
    %513 = vmatpush.msra.mxu0 %v491
    %514 = vmatpush.msra.mxu0 %v490
    %515 = vmatpush.msra.mxu0 %v489
    %516 = vmatpush.msra.mxu0 %v488
    %517 = vmatmul.f32.gmra.mxu0 %v496
    %v518 = vpop.f32.mrf.mxu0
    %v519 = vadd.f32 %v493, %v518
    %520 = vmatmul.f32.gmra.mxu0 %v499
    %v521 = vpop.f32.mrf.mxu0
    %v522 = vadd.f32 %v493, %v521
    %523 = vdwg.mxu0
    %v524 = vadd.f32 %v519, %v68
    %v525 = vadd.f32 %v522, %v69
    %526 = vst.msk [vmem:[#allocation8] sm:$0xff] %vm71, %v524
    %527 = vst.msk [vmem:[#allocation8 + $0x8] sm:$0xff] %vm71, %v525
    // Predicated region
    $region34: #{tpu_custom_call.1} parent=1 // pred_check
      _
    $region35: #{tpu_custom_call.1} parent=1 // pred_check_branch
      %529 = sbr.rel (0) target = $region37
    $region36: #{tpu_custom_call.1} parent=1 // pred_region
      %531 = vsyncadd [#allocation4], 0
      %s532 = sshll.u32 [#allocation8], 4
      %s533 = int_to_ptr.vmem [resolvable:$true] %s532
      %s534 = sshll.u32 %s5, 4
      %s535 = int_to_ptr.hbm [resolvable:$true] %s534
      %540 = dma.vmem_to_hbm [thread:$0]  %s533, 256, %s535, [#allocation4], 128, 128, 8
    $region37: #{tpu_custom_call.1} parent=1 // pred_fallthru
      _
    // Predicated region
    $region38: #{tpu_custom_call.1} parent=1 // pred_check
      _
    $region39: #{tpu_custom_call.1} parent=1 // pred_check_branch
      %542 = sbr.rel (0) target = $region41
    $region40: #{tpu_custom_call.1} parent=1 // pred_region
      %544 = dma.done [#allocation4], 256
    $region41: #{tpu_custom_call.1} parent=1 // pred_fallthru
      _
    %545 = vsyncpa [#allocation3], 1
    %546 = vsyncpa [#allocation6], 1
    %547 = vsyncpa [#allocation4], 1

</llo_original>
